<compile_context>
chip_gen: v7x
topology: tpu7x:2x2x1
jax: 0.10.0
libtpu: 0.0.40
codegen_flags: <defaults>
</compile_context>

<pallas_src>
import jax
import jax.numpy as jnp
from jax.experimental import pallas as pl
from jax.experimental.pallas import tpu as pltpu

LANE = 128                     # lane (fast) axis width
SUBLANE_GRANULE = 32           # sublane multiple safe for f32(8)/bf16(16)/int8(32)
MIN_PALLAS_BYTES = 64 * 1024   # below this, plain fused XLA is faster
SPLIT_MIN_ROWS = 1024          # >= 512 KiB/operand (f32): split into >=2 grid steps


def fusion_kernel(scale_ref, x1_ref, x2_ref, o_ref):
    # scale_ref: (2,) f32 in SMEM via scalar prefetch: [1/(1+w), w/(1+w)]
    # x1_ref / x2_ref / o_ref: VMEM tiles ((tm, 128) or flat (be,)).
    inv = scale_ref[0]
    winv = scale_ref[1]
    o_ref[...] = (x1_ref[...] * inv + x2_ref[...] * winv).astype(o_ref.dtype)


def _round_up(x, m):
    return -(-x // m) * m


def _target_block_bytes():
    # ~2 MiB/operand is the v5e/v6e sweet spot (fits v5e's 16 MiB scoped VMEM
    # default with double buffering); v7x (64 MiB VMEM, ~3.2 TB/s HBM) prefers
    # ~4 MiB tiles to amortize the per-step cost.
    try:
        if pltpu.get_tpu_info().vmem_capacity_bytes <= 64 * 2**20:
            return 4 * 2**20
    except Exception:
        pass
    return 2 * 2**20


def _pick_block(n, granule, target, split_min):
    """Block length along the tiled axis (rows for 2-D path, elements for 1-D)."""
    if n > target:
        return target                                  # big: grid >= 2 automatically
    if n >= split_min:
        return _round_up(-(-n // 2), granule)          # 2 steps -> both TCs on v7x
    return n                                           # single full-array block


def fusion(x1, x2, w, *, min_pallas_bytes=MIN_PALLAS_BYTES, force_pallas=False):
    assert x1.shape == x2.shape and x1.dtype == x2.dtype
    dtype = x1.dtype
    assert jnp.issubdtype(dtype, jnp.floating), "Fusion kernel is float-only"
    orig_shape = x1.shape
    itemsize = dtype.itemsize

    # Fusion weights, computed once (matches the PyTorch forward exactly).
    w = jnp.asarray(w, jnp.float32)
    inv = 1.0 / (1.0 + w)           # 1 / (1 + w)
    winv = w / (w + 1.0)            # w / (w + 1)

    total = int(x1.size)
    if total == 0:
        return jnp.zeros(orig_shape, dtype)

    # Tiny-tensor bypass: launch + pipeline prologue dwarf the work.
    if not force_pallas and total * itemsize < min_pallas_bytes:
        return (x1 * inv + x2 * winv).astype(dtype)

    scales = jnp.stack([inv, winv])       # (2,) f32 -> SMEM scalar prefetch
    x1_flat = x1.reshape(-1)              # contiguous reshapes: free (bitcast)
    x2_flat = x2.reshape(-1)

    target_bytes = _target_block_bytes()

    if total % LANE == 0:
        # Lane-dense 2-D path: [rows, 128]; at most the sublane dim is ragged.
        rows = total // LANE
        row_target = max(SUBLANE_GRANULE,
                         (target_bytes // (LANE * itemsize))
                         // SUBLANE_GRANULE * SUBLANE_GRANULE)
        tm = _pick_block(rows, SUBLANE_GRANULE, row_target, SPLIT_MIN_ROWS)
        grid = (pl.cdiv(rows, tm),)
        block_bytes = tm * LANE * itemsize
        spec = pl.BlockSpec((tm, LANE), lambda i, s: (i, 0))
        args = (x1_flat.reshape(rows, LANE), x2_flat.reshape(rows, LANE))
        out_shape = jax.ShapeDtypeStruct((rows, LANE), dtype)
    else:
        # Flat 1-D path for non-128-divisible sizes: no pad / slice copies.
        granule = SUBLANE_GRANULE * LANE
        elem_target = max(granule,
                          (target_bytes // itemsize) // granule * granule)
        be = _pick_block(total, granule, elem_target, SPLIT_MIN_ROWS * LANE)
        grid = (pl.cdiv(total, be),)
        block_bytes = be * itemsize
        spec = pl.BlockSpec((be,), lambda i, s: (i,))
        args = (x1_flat, x2_flat)
        out_shape = jax.ShapeDtypeStruct((total,), dtype)

    # 3 arrays x 2 pipeline buffers x tile + ~25% headroom (explicit so larger
    # tiles never hit the per-generation scoped-VMEM defaults).
    vmem_limit = int(min(max(6 * block_bytes * 1.25, 12 * 2**20), 40 * 2**20))

    out = pl.pallas_call(
        fusion_kernel,
        out_shape=out_shape,
        grid_spec=pltpu.PrefetchScalarGridSpec(
            num_scalar_prefetch=1,            # `scales` -> SMEM, read once
            grid=grid,
            in_specs=[spec, spec],
            out_specs=spec,
        ),
        compiler_params=pltpu.CompilerParams(
            dimension_semantics=("parallel",),   # shards grid across TCs on v7x
            vmem_limit_bytes=vmem_limit),
        cost_estimate=pl.CostEstimate(
            flops=3 * total, transcendentals=0,
            bytes_accessed=3 * total * itemsize),
    )(scales, *args)

    return out.reshape(orig_shape)


def _reference(x1, x2, w):
    w = jnp.asarray(w, jnp.float32)
    return (x1 * (1.0 / (1.0 + w)) + x2 * (w / (w + 1.0))).astype(x1.dtype)


if __name__ == "__main__":
    key = jax.random.PRNGKey(0)
    ks = jax.random.split(key, 8)
    w = jnp.float32(0.1)   # nn.Parameter(torch.tensor(0.1))

    # --- module-sized demo (2,4,16,16); force the Pallas path so the kernel runs ---
    x1 = jax.random.normal(ks[0], (2, 4, 16, 16), dtype=jnp.float32)
    x2 = jax.random.normal(ks[1], (2, 4, 16, 16), dtype=jnp.float32)
    out = jax.block_until_ready(fusion(x1, x2, w, force_pallas=True))
    assert out.shape == x1.shape and out.dtype == jnp.float32
    assert jnp.allclose(out, _reference(x1, x2, w), atol=1e-6, rtol=1e-6)

    # --- tiny odd shape: takes the fused-XLA bypass (below 64 KiB) ---
    a1 = jax.random.normal(ks[2], (2, 3, 37, 53), dtype=jnp.float32)
    a2 = jax.random.normal(ks[3], (2, 3, 37, 53), dtype=jnp.float32)
    out_a = jax.block_until_ready(fusion(a1, a2, w))
    assert jnp.allclose(out_a, _reference(a1, a2, w), atol=1e-6, rtol=1e-6)

    # --- large 128-divisible shape: 2-D multi-step pipelined path (grid >= 2) ---
    b1 = jax.random.normal(ks[4], (2, 4, 128, 160), dtype=jnp.float32)
    b2 = jax.random.normal(ks[5], (2, 4, 128, 160), dtype=jnp.float32)
    out_b = jax.block_until_ready(fusion(b1, b2, w))
    assert jnp.allclose(out_b, _reference(b1, b2, w), atol=1e-6, rtol=1e-6)

    # --- large non-128-divisible shape: flat 1-D path, ragged last block, no pad ---
    c1 = jax.random.normal(ks[6], (3, 5, 251, 173), dtype=jnp.float32)
    c2 = jax.random.normal(ks[7], (3, 5, 251, 173), dtype=jnp.float32)
    out_c = jax.block_until_ready(fusion(c1, c2, w))
    assert jnp.allclose(out_c, _reference(c1, c2, w), atol=1e-6, rtol=1e-6)

    # --- bf16 path through the kernel (dtype-aware block granule) ---
    d1 = b1.astype(jnp.bfloat16)
    d2 = b2.astype(jnp.bfloat16)
    out_d = jax.block_until_ready(fusion(d1, d2, w))
    assert out_d.dtype == jnp.bfloat16
    assert jnp.allclose(out_d.astype(jnp.float32),
                        _reference(d1, d2, w).astype(jnp.float32),
                        atol=2e-2, rtol=2e-2)

    print("KERNEL_OK")
</pallas_src>

<mosaic_0001>
module attributes {stable_mosaic.version = 11 : i64} {
  func.func @fusion_kernel(%arg0: i32, %arg1: memref<2xf32, #tpu.memory_space<smem>>, %arg2: memref<16x128xf32, #tpu.memory_space<vmem>>, %arg3: memref<16x128xf32, #tpu.memory_space<vmem>>, %arg4: memref<16x128xf32, #tpu.memory_space<vmem>>) attributes {dimension_semantics = [#tpu.dimension_semantics<parallel>], iteration_bounds = array<i64: 1>, scalar_prefetch = 1 : i64, scratch_operands = 0 : i64, tpu.core_type = #tpu.core_type<tc>, window_params = [{transform_indices = @transform_0, window_bounds = array<i64: 16, 128>}, {transform_indices = @transform_1, window_bounds = array<i64: 16, 128>}, {transform_indices = @transform_2, window_bounds = array<i64: 16, 128>}]} {
    %c0 = arith.constant 0 : index
    %0 = memref.load %arg1[%c0] : memref<2xf32, #tpu.memory_space<smem>>
    %c1 = arith.constant 1 : index
    %1 = memref.load %arg1[%c1] : memref<2xf32, #tpu.memory_space<smem>>
    %c0_0 = arith.constant 0 : index
    %c0_1 = arith.constant 0 : index
    %2 = vector.load %arg2[%c0_0, %c0_1] : memref<16x128xf32, #tpu.memory_space<vmem>>, vector<16x128xf32>
    %3 = vector.broadcast %0 : f32 to vector<16x128xf32>
    %4 = arith.mulf %2, %3 : vector<16x128xf32>
    %c0_2 = arith.constant 0 : index
    %c0_3 = arith.constant 0 : index
    %5 = vector.load %arg3[%c0_2, %c0_3] : memref<16x128xf32, #tpu.memory_space<vmem>>, vector<16x128xf32>
    %6 = vector.broadcast %1 : f32 to vector<16x128xf32>
    %7 = arith.mulf %5, %6 : vector<16x128xf32>
    %8 = arith.addf %4, %7 : vector<16x128xf32>
    %c0_4 = arith.constant 0 : index
    %c0_5 = arith.constant 0 : index
    %9 = vector.load %arg4[%c0_4, %c0_5] : memref<16x128xf32, #tpu.memory_space<vmem>>, vector<16x128xf32>
    tpu.vector_store %arg4[%c0_4, %c0_5], %8 {strides = array<i32>} : memref<16x128xf32, #tpu.memory_space<vmem>>, vector<16x128xf32>,
    return
  }
  func.func @transform_0(%arg0: i32, %arg1: memref<2xf32, #tpu.memory_space<smem>>) -> (i32, i32) {
    %c0_i32 = arith.constant 0 : i32
    %c0_i32_0 = arith.constant 0 : i32
    return %arg0, %c0_i32 : i32, i32
  }
  func.func @transform_1(%arg0: i32, %arg1: memref<2xf32, #tpu.memory_space<smem>>) -> (i32, i32) {
    %c0_i32 = arith.constant 0 : i32
    %c0_i32_0 = arith.constant 0 : i32
    return %arg0, %c0_i32 : i32, i32
  }
  func.func @transform_2(%arg0: i32, %arg1: memref<2xf32, #tpu.memory_space<smem>>) -> (i32, i32) {
    %c0_i32 = arith.constant 0 : i32
    %c0_i32_0 = arith.constant 0 : i32
    return %arg0, %c0_i32 : i32, i32
  }
}

</mosaic_0001>

<llo_original>
// kernel: tpu_custom_call.1
$region0: #{tpu_custom_call.1}
  #allocation0 [shape = 'u32[]', space=smem, size = 0x4, offset = 0x4, fixed_abs, tag = 'smem constant byte address 0x4 - core index']
  #allocation1 [shape = 'u32[144,128]{1,0:T(1,128)}', space=vmem, size = 0x12000, scoped, tag = 'internal scratch']
  #allocation2 [shape = 's32[1]{0}', space=sflag, size = 0x4, scoped, tag = 'scoped memory for tpu_custom_call.1']
  #allocation3 [shape = 'u8[512]{0}', space=smem, size = 0x200, scoped, tag = 'prefetched SMEM operand 0']
  %s0 = inlined_call_operand.hbm [shape: f32[2], index: 0, kind: input, shape index: {}]
  %s1 = inlined_call_operand.hbm [shape: f32[16,128], index: 1, kind: input, shape index: {}]
  %s2 = inlined_call_operand.hbm [shape: f32[16,128], index: 2, kind: input, shape index: {}]
  %s3 = inlined_call_operand.hbm [shape: f32[16,128], index: 3, kind: output, shape index: {}]
  %s4 = sld [smem:[#allocation0]]
  $region26: #{tpu_custom_call.1} parent=0
    _
  %s6 = ssub.s32 1, %s4
  %s7 = scalar_select 0, %s6, %s4
  %9 = dma.hbm_to_smem %s0, 16, [#allocation3], [#allocation2]
  %10 = dma.done [#allocation2], 16
  %11 = sfence
  $region1: #{tpu_custom_call.1} parent=0
    #allocation4 [shape = 'u8[8192]{0}', space=vmem, size = 0x2000, scoped, tag = 'input window, operand 1, single buffered']
    #allocation5 [shape = 's32[1]{0}', space=sflag, size = 0x4, scoped, tag = 'scoped memory for tpu_custom_call.1']
    #allocation6 [shape = 's32[1]{0}', space=sflag, size = 0x4, scoped, tag = 'scoped memory for tpu_custom_call.1']
    #allocation7 [shape = 'u8[8192]{0}', space=vmem, size = 0x2000, scoped, tag = 'input window, operand 2, single buffered']
    #allocation8 [shape = 's32[1]{0}', space=sflag, size = 0x4, scoped, tag = 'scoped memory for tpu_custom_call.1']
    #allocation9 [shape = 'u8[8192]{0}', space=vmem, size = 0x2000, scoped, tag = 'output window, operand 0, single buffered']
    %12 = vsyncpa [#allocation5], 0
    %13 = vsyncpa [#allocation8], 0
    %14 = vsyncpa [#allocation6], 0
    // Predicated region
    $region2: #{tpu_custom_call.1} parent=1 // pred_check
      _
    $region3: #{tpu_custom_call.1} parent=1 // pred_check_branch
      %16 = sbr.rel (0) target = $region5
    $region4: #{tpu_custom_call.1} parent=1 // pred_region
      %s18 = ssub.s32 256, 256
      %19 = vsyncadd [#allocation5], %s18
      %s20 = sshll.u32 [#allocation4], 4
      %s21 = int_to_ptr.vmem [resolvable:$true] %s20
      %26 = dma.hbm_to_vmem [thread:$0]  %s1, 256, %s21, [#allocation5], 128, 128, 8
    $region5: #{tpu_custom_call.1} parent=1 // pred_fallthru
      _
    // Predicated region
    $region6: #{tpu_custom_call.1} parent=1 // pred_check
      _
    $region7: #{tpu_custom_call.1} parent=1 // pred_check_branch
      %28 = sbr.rel (0) target = $region9
    $region8: #{tpu_custom_call.1} parent=1 // pred_region
      %s30 = ssub.s32 256, 256
      %31 = vsyncadd [#allocation8], %s30
      %s32 = sshll.u32 [#allocation7], 4
      %s33 = int_to_ptr.vmem [resolvable:$true] %s32
      %38 = dma.hbm_to_vmem [thread:$0]  %s2, 256, %s33, [#allocation8], 128, 128, 8
    $region9: #{tpu_custom_call.1} parent=1 // pred_fallthru
      _
    // Predicated region
    $region10: #{tpu_custom_call.1} parent=1 // pred_check
      _
    $region11: #{tpu_custom_call.1} parent=1 // pred_check_branch
      %40 = sbr.rel (0) target = $region13
    $region12: #{tpu_custom_call.1} parent=1 // pred_region
      %41 = dma.done [#allocation5], 256
    $region13: #{tpu_custom_call.1} parent=1 // pred_fallthru
      _
    // Predicated region
    $region14: #{tpu_custom_call.1} parent=1 // pred_check
      _
    $region15: #{tpu_custom_call.1} parent=1 // pred_check_branch
      %43 = sbr.rel (0) target = $region17
    $region16: #{tpu_custom_call.1} parent=1 // pred_region
      %44 = dma.done [#allocation8], 256
    $region17: #{tpu_custom_call.1} parent=1 // pred_fallthru
      _
    %s45 = sld [smem:[#allocation3]]
    %s46 = sld [smem:[#allocation3 + $0x1]]
    %v47 = vld [vmem:[#allocation4] sm:$0xff]
    %v48 = vld [vmem:[#allocation4 + $0x8] sm:$0xff]
    %v49 = vstv %s45
    %v50 = vmul.f32 %v47, %v49
    %v51 = vmul.f32 %v48, %v49
    %v52 = vld [vmem:[#allocation7] sm:$0xff]
    %v53 = vld [vmem:[#allocation7 + $0x8] sm:$0xff]
    %v54 = vstv %s46
    %v55 = vmul.f32 %v52, %v54
    %v56 = vmul.f32 %v53, %v54
    %v57 = vadd.f32 %v50, %v55
    %v58 = vadd.f32 %v51, %v56
    %59 = vst [vmem:[#allocation9] sm:$0xff] %v57
    %60 = vst [vmem:[#allocation9 + $0x8] sm:$0xff] %v58
    // Predicated region
    $region18: #{tpu_custom_call.1} parent=1 // pred_check
      _
    $region19: #{tpu_custom_call.1} parent=1 // pred_check_branch
      %62 = sbr.rel (0) target = $region21
    $region20: #{tpu_custom_call.1} parent=1 // pred_region
      %s64 = ssub.s32 256, 256
      %65 = vsyncadd [#allocation6], %s64
      %s66 = sshll.u32 [#allocation9], 4
      %s67 = int_to_ptr.vmem [resolvable:$true] %s66
      %72 = dma.vmem_to_hbm [thread:$0]  %s67, 256, %s3, [#allocation6], 128, 128, 8
    $region21: #{tpu_custom_call.1} parent=1 // pred_fallthru
      _
    // Predicated region
    $region22: #{tpu_custom_call.1} parent=1 // pred_check
      _
    $region23: #{tpu_custom_call.1} parent=1 // pred_check_branch
      %74 = sbr.rel (0) target = $region25
    $region24: #{tpu_custom_call.1} parent=1 // pred_region
      %75 = dma.done [#allocation6], 256
    $region25: #{tpu_custom_call.1} parent=1 // pred_fallthru
      _
    %76 = vsyncpa [#allocation5], 1
    %77 = vsyncpa [#allocation8], 1
    %78 = vsyncpa [#allocation6], 1

</llo_original>
